<compile_context>
chip_gen: v7x
topology: tpu7x:2x2x1
jax: 0.10.0
libtpu: 0.0.40
codegen_flags: <defaults>
</compile_context>

<pallas_src>
import jax
import jax.numpy as jnp
from jax.experimental import pallas as pl
from jax.experimental.pallas import tpu as pltpu


def _copy_kernel(x_ref, o_ref):
    # Identity copy of a (TB, size*length) tile.  Last dim is the full flat
    # row -> lane-dense, unmasked vector stores.
    o_ref[...] = x_ref[...]


def _pick_row_tile(B: int, flat: int, itemsize: int) -> int:
    """Rows per grid step: B itself if small, else a multiple of 8 sized so
    that 2 input + 2 output double-buffers stay well under ~16 MiB (safe on
    v7x's 32 MiB scoped / 64 MiB physical VMEM)."""
    budget_bytes = 16 * 2**20
    cap = budget_bytes // (4 * flat * itemsize)
    cap = max(8, (cap // 8) * 8)
    cap = min(cap, 1024)
    if B <= cap:
        return B          # block == full sublane extent: always legal
    return cap            # multiple of 8; partial last block handled by Pallas


def unflatten(x: jax.Array, size: int, length: int) -> jax.Array:
    """Pallas equivalent of UnFlatten(size, length).forward(x).

    x: (B, size*length)  ->  (B, size, length)
    """
    B, flat = x.shape
    assert flat == size * length, (
        f"input last dim {flat} must equal size*length = {size * length}"
    )

    itemsize = jnp.dtype(x.dtype).itemsize
    tb = _pick_row_tile(B, flat, itemsize)
    grid = (pl.cdiv(B, tb),)

    out_flat = pl.pallas_call(
        _copy_kernel,
        out_shape=jax.ShapeDtypeStruct((B, flat), x.dtype),
        grid_spec=pltpu.PrefetchScalarGridSpec(
            num_scalar_prefetch=0,
            grid=grid,
            in_specs=[pl.BlockSpec((tb, flat), lambda b: (b, 0))],
            out_specs=pl.BlockSpec((tb, flat), lambda b: (b, 0)),
        ),
        compiler_params=pltpu.CompilerParams(
            dimension_semantics=("parallel",),
            vmem_limit_bytes=32 * 2**20,
        ),
        cost_estimate=pl.CostEstimate(
            flops=0,
            transcendentals=0,
            bytes_accessed=2 * B * flat * itemsize,
        ),
    )(x)

    # Row-major reshape of a contiguous array: metadata-only, zero HBM traffic.
    return out_flat.reshape(B, size, length)


if __name__ == "__main__":
    # Small deterministic example consistent with the module:
    # batch=2, size=4, length=32  ->  flat feature dim = 128.
    B, SIZE, LENGTH = 2, 4, 32

    key = jax.random.PRNGKey(0)
    x = jax.random.normal(key, (B, SIZE * LENGTH), dtype=jnp.float32)

    out = unflatten(x, SIZE, LENGTH)
    out = jax.block_until_ready(out)

    # Reference: plain reshape (what torch .view does on contiguous input).
    ref = x.reshape(B, SIZE, LENGTH)
    assert out.shape == (B, SIZE, LENGTH), out.shape
    assert out.dtype == x.dtype, out.dtype
    assert jnp.array_equal(out, ref), "mismatch vs reference reshape"

    print("KERNEL_OK")
</pallas_src>

<mosaic_0001>
module attributes {stable_mosaic.version = 11 : i64} {
  func.func @_copy_kernel(%arg0: i32, %arg1: memref<2x128xf32, #tpu.memory_space<vmem>>, %arg2: memref<2x128xf32, #tpu.memory_space<vmem>>) attributes {dimension_semantics = [#tpu.dimension_semantics<parallel>], iteration_bounds = array<i64: 1>, scalar_prefetch = 0 : i64, scratch_operands = 0 : i64, tpu.core_type = #tpu.core_type<tc>, window_params = [{transform_indices = @transform_0, window_bounds = array<i64: 2, 128>}, {transform_indices = @transform_1, window_bounds = array<i64: 2, 128>}]} {
    %c0 = arith.constant 0 : index
    %c0_0 = arith.constant 0 : index
    %0 = vector.load %arg1[%c0, %c0_0] : memref<2x128xf32, #tpu.memory_space<vmem>>, vector<2x128xf32>
    %c0_1 = arith.constant 0 : index
    %c0_2 = arith.constant 0 : index
    %1 = vector.load %arg2[%c0_1, %c0_2] : memref<2x128xf32, #tpu.memory_space<vmem>>, vector<2x128xf32>
    tpu.vector_store %arg2[%c0_1, %c0_2], %0 {strides = array<i32>} : memref<2x128xf32, #tpu.memory_space<vmem>>, vector<2x128xf32>,
    return
  }
  func.func @transform_0(%arg0: i32) -> (i32, i32) {
    %c0_i32 = arith.constant 0 : i32
    %c0_i32_0 = arith.constant 0 : i32
    return %arg0, %c0_i32 : i32, i32
  }
  func.func @transform_1(%arg0: i32) -> (i32, i32) {
    %c0_i32 = arith.constant 0 : i32
    %c0_i32_0 = arith.constant 0 : i32
    return %arg0, %c0_i32 : i32, i32
  }
}

</mosaic_0001>

<llo_original>
// kernel: tpu_custom_call.1
$region0: #{tpu_custom_call.1}
  #allocation0 [shape = 'u32[]', space=smem, size = 0x4, offset = 0x4, fixed_abs, tag = 'smem constant byte address 0x4 - core index']
  #allocation1 [shape = 'u32[144,128]{1,0:T(1,128)}', space=vmem, size = 0x12000, scoped, tag = 'internal scratch']
  %s0 = inlined_call_operand.hbm [shape: f32[2,128], index: 0, kind: input, shape index: {}]
  %s1 = inlined_call_operand.hbm [shape: f32[2,128], index: 1, kind: output, shape index: {}]
  %s2 = sld [smem:[#allocation0]]
  $region18: #{tpu_custom_call.1} parent=0
    _
  %s4 = ssub.s32 1, %s2
  %s5 = scalar_select 0, %s4, %s2
  $region1: #{tpu_custom_call.1} parent=0
    #allocation2 [shape = 'u8[1024]{0}', space=vmem, size = 0x400, scoped, tag = 'input window, operand 0, single buffered']
    #allocation3 [shape = 's32[1]{0}', space=sflag, size = 0x4, scoped, tag = 'scoped memory for tpu_custom_call.1']
    #allocation4 [shape = 's32[1]{0}', space=sflag, size = 0x4, scoped, tag = 'scoped memory for tpu_custom_call.1']
    #allocation5 [shape = 'u8[1024]{0}', space=vmem, size = 0x400, scoped, tag = 'output window, operand 0, single buffered']
    %6 = vsyncpa [#allocation3], 0
    %7 = vsyncpa [#allocation4], 0
    // Predicated region
    $region2: #{tpu_custom_call.1} parent=1 // pred_check
      _
    $region3: #{tpu_custom_call.1} parent=1 // pred_check_branch
      %9 = sbr.rel (0) target = $region5
    $region4: #{tpu_custom_call.1} parent=1 // pred_region
      %s11 = ssub.s32 32, 32
      %12 = vsyncadd [#allocation3], %s11
      %s14 = sshll.u32 [#allocation2], 4
      %s15 = int_to_ptr.vmem [resolvable:$true] %s14
      %17 = dma.hbm_to_vmem [thread:$0]  %s0, 32, %s15, [#allocation3]
    $region5: #{tpu_custom_call.1} parent=1 // pred_fallthru
      _
    // Predicated region
    $region6: #{tpu_custom_call.1} parent=1 // pred_check
      _
    $region7: #{tpu_custom_call.1} parent=1 // pred_check_branch
      %19 = sbr.rel (0) target = $region9
    $region8: #{tpu_custom_call.1} parent=1 // pred_region
      %20 = dma.done [#allocation3], 32
    $region9: #{tpu_custom_call.1} parent=1 // pred_fallthru
      _
    %v21 = vld [vmem:[#allocation2] sm:$0x3]
    %22 = vst [vmem:[#allocation5] sm:$0x3] %v21
    // Predicated region
    $region10: #{tpu_custom_call.1} parent=1 // pred_check
      _
    $region11: #{tpu_custom_call.1} parent=1 // pred_check_branch
      %24 = sbr.rel (0) target = $region13
    $region12: #{tpu_custom_call.1} parent=1 // pred_region
      %s26 = ssub.s32 32, 32
      %27 = vsyncadd [#allocation4], %s26
      %s29 = sshll.u32 [#allocation5], 4
      %s30 = int_to_ptr.vmem [resolvable:$true] %s29
      %32 = dma.vmem_to_hbm [thread:$0]  %s30, 32, %s1, [#allocation4]
    $region13: #{tpu_custom_call.1} parent=1 // pred_fallthru
      _
    // Predicated region
    $region14: #{tpu_custom_call.1} parent=1 // pred_check
      _
    $region15: #{tpu_custom_call.1} parent=1 // pred_check_branch
      %34 = sbr.rel (0) target = $region17
    $region16: #{tpu_custom_call.1} parent=1 // pred_region
      %35 = dma.done [#allocation4], 32
    $region17: #{tpu_custom_call.1} parent=1 // pred_fallthru
      _
    %36 = vsyncpa [#allocation3], 1
    %37 = vsyncpa [#allocation4], 1

</llo_original>
